<compile_context>
chip_gen: v6e
topology: v6e:2x2x1
jax: 0.10.0
libtpu: 0.0.40
codegen_flags: <defaults>
</compile_context>

<pallas_src>
import numpy as np
import jax
import jax.numpy as jnp
from jax.experimental import pallas as pl
from jax.experimental.pallas import tpu as pltpu


_NUM_GROUPS = 7          # group 0: compare_loss, groups 1..6: entity heads
_NEG_INF = -1e30         # class-axis padding value (exp underflows to exactly 0)


# ----------------------------------------------------------------------------
# Fused weighted cross-entropy kernel (all 7 CE losses in one pallas_call)
# ----------------------------------------------------------------------------
def _fused_ce_kernel(logits_ref, tgt_ref, w_ref, gid_ref, out_ref):
    """Each lane (column) is one CE example:
         nll_r = logsumexp(logits[:, r]) - logits[tgt_r, r]
       Emits a (16, 128) tile of per-lane partial sums for this column block:
         rows 0..7  : sum of  w_r * nll_r   per group (group id = sublane row)
         rows 8..15 : sum of  w_r           per group
       Padded columns carry w == 0 and contribute nothing.
    """
    x = logits_ref[...].astype(jnp.float32)               # [C, BC]
    t = tgt_ref[...]                                       # [1, BC] int32
    w = w_ref[...].astype(jnp.float32)                     # [1, BC]
    g = gid_ref[...]                                       # [1, BC] int32

    # log-softmax NLL without materializing full log-probs:
    #   nll = (lse + m) - logits[target]
    m = jnp.max(x, axis=0, keepdims=True)                  # [1, BC]
    lse = jnp.log(jnp.sum(jnp.exp(x - m), axis=0, keepdims=True))   # [1, BC]
    cls = jax.lax.broadcasted_iota(jnp.int32, x.shape, 0)
    picked = jnp.sum(jnp.where(cls == t, x, 0.0), axis=0, keepdims=True)  # [1, BC]
    nll = (lse + m) - picked                                # [1, BC]
    wnll = w * nll                                          # [1, BC]

    bc = x.shape[1]
    grow = jax.lax.broadcasted_iota(jnp.int32, (8, bc), 0)  # group id per sublane row
    gmask = grow == g                                       # [8, BC]
    num8 = jnp.where(gmask, wnll, 0.0)                      # [8, BC]
    den8 = jnp.where(gmask, w, 0.0)                         # [8, BC]

    def _fold(a):                                           # lane-fold BC -> 128
        acc = a[:, 0:128]
        for c in range(1, bc // 128):
            acc = acc + a[:, c * 128:(c + 1) * 128]
        return acc

    out_ref[0:8, :] = _fold(num8)
    out_ref[8:16, :] = _fold(den8)


def _col_map(i):
    return (0, i)


def _out_map(i):
    return (i, 0)


def fused_weighted_ce(logits_rows, targets, row_weights, group_ids,
                      num_groups=_NUM_GROUPS, max_block_cols=512):
    """logits_rows: [R, C] (any float dtype), targets/group_ids: [R] int,
       row_weights: [R] float.  Returns (num[G], den[G]) f32 such that
       loss_g = num_g / den_g == sum_{i in g} w_i * nll_i / sum_{i in g} w_i
       (== PyTorch F.cross_entropy(..., weight, reduction='mean') semantics)."""
    logits_rows = jnp.asarray(logits_rows)
    r, c = logits_rows.shape
    targets = np.asarray(targets, np.int32)
    row_weights = np.asarray(row_weights, np.float32)
    group_ids = np.asarray(group_ids, np.int32)

    r_pad128 = ((r + 127) // 128) * 128
    bc = r_pad128 if r_pad128 <= max_block_cols else max_block_cols
    r_pad = ((r + bc - 1) // bc) * bc
    nb = r_pad // bc

    # Lane-dense slab: classes on sublanes, examples on the 128-lane axis.
    # (Input dtype is preserved; cast to f32 happens inside the kernel.)
    slab = jnp.zeros((c, r_pad), logits_rows.dtype).at[:, :r].set(logits_rows.T)
    tgt = np.zeros((1, r_pad), np.int32)
    tgt[0, :r] = targets
    w = np.zeros((1, r_pad), np.float32)          # 0-weight pad columns
    w[0, :r] = row_weights
    gid = np.full((1, r_pad), num_groups, np.int32)  # pad columns -> unused group
    gid[0, :r] = group_ids

    out = pl.pallas_call(
        _fused_ce_kernel,
        out_shape=jax.ShapeDtypeStruct((nb * 16, 128), jnp.float32),
        grid=(nb,),
        in_specs=[
            pl.BlockSpec((c, bc), _col_map),
            pl.BlockSpec((1, bc), _col_map),
            pl.BlockSpec((1, bc), _col_map),
            pl.BlockSpec((1, bc), _col_map),
        ],
        out_specs=pl.BlockSpec((16, 128), _out_map),
        compiler_params=pltpu.CompilerParams(
            # independent per-block partials -> both v7x TensorCores usable
            dimension_semantics=("parallel",),
            # tiny blocks (<= 512 x C_max f32, double-buffered) fit easily in
            # the 32 MiB scoped / 64 MiB physical VMEM on v7x
            vmem_limit_bytes=32 * 1024 * 1024),
    )(slab, jnp.asarray(tgt), jnp.asarray(w), jnp.asarray(gid))

    sums = jnp.sum(out.reshape(nb, 16, 128), axis=(0, 2))   # [16]
    return sums[:num_groups], sums[8:8 + num_groups]


# ----------------------------------------------------------------------------
# Cardinality-error kernel
# ----------------------------------------------------------------------------
def _cardinality_kernel(logits_ref, tgt_len_ref, out_ref):
    """card_pred[b] = #queries with argmax over classes != last class;
       out = mean_b |card_pred[b] - tgt_len[b]|."""
    x = logits_ref[...].astype(jnp.float32)                  # [B, Q, C]
    c = x.shape[-1]
    last = x[:, :, c - 1:c]                                   # [B, Q, 1] static slice
    rest_max = jnp.max(x[:, :, :c - 1], axis=-1, keepdims=True)   # [B, Q, 1]
    # first-index-wins argmax: argmax != C-1  <=>  max over earlier >= last
    non_empty = (rest_max >= last).astype(jnp.float32)        # [B, Q, 1]
    card_pred = jnp.sum(non_empty, axis=1)                    # [B, 1]
    err = jnp.abs(card_pred - tgt_len_ref[...])               # [B, 1]
    out_ref[0, 0] = jnp.mean(err)


def cardinality_error(rel_logits, tgt_lengths):
    """rel_logits: [B, Q, C] (upstream dtype), tgt_lengths: [B, 1] f32 -> scalar."""
    out = pl.pallas_call(
        _cardinality_kernel,
        out_shape=jax.ShapeDtypeStruct((1, 1), jnp.float32),
        in_specs=[pl.BlockSpec(memory_space=pltpu.MemorySpace.VMEM)] * 2,
        out_specs=pl.BlockSpec(memory_space=pltpu.MemorySpace.VMEM),
    )(jnp.asarray(rel_logits), jnp.asarray(tgt_lengths, jnp.float32))
    return out[0, 0]


# ----------------------------------------------------------------------------
# Matcher (cost on device, assignment on host)
# ----------------------------------------------------------------------------
_POS_KEYS = ('sub_start', 'sub_end', 'obj_start', 'obj_end',
             'aspect_start', 'aspect_end')


def hungarian_matcher_sub_absa(outputs, targets):
    # TODO(synk): exact Hungarian assignment (scipy linear_sum_assignment) has
    # no Pallas/JAX equivalent; deterministic greedy assignment over the same
    # (relation + span probability) cost is used instead.
    b_count = len(targets)
    n_ts = [len(t['relation']) for t in targets]
    empty = (np.zeros(0, np.int64), np.zeros(0, np.int64))
    if all(n == 0 for n in n_ts):
        return [empty for _ in range(b_count)]

    t_max = max(n_ts)
    rel_idx = np.zeros((b_count, t_max), np.int32)
    span_idx = {k: np.zeros((b_count, t_max), np.int32) for k in _POS_KEYS}
    for b, t in enumerate(targets):
        n = n_ts[b]
        if n:
            rel_idx[b, :n] = np.asarray(t['relation'])
            for k in _POS_KEYS:
                span_idx[k][b, :n] = np.asarray(t[k + '_index'])

    # Cost matrix built on-device; only the tiny [B, Q, T] result goes to host.
    rel_logits = jnp.asarray(outputs['pred_rel_logits'])
    bq = rel_logits.shape[1]
    rel_prob = jax.nn.softmax(rel_logits.astype(jnp.float32), axis=-1)
    ridx = jnp.broadcast_to(jnp.asarray(rel_idx)[:, None, :], (b_count, bq, t_max))
    cost = -jnp.take_along_axis(rel_prob, ridx, axis=2)                 # [B, Q, T]
    span = jnp.zeros_like(cost)
    for k in _POS_KEYS:
        p = jax.nn.softmax(jnp.asarray(outputs[k + '_logits']).astype(jnp.float32), -1)
        sidx = jnp.broadcast_to(jnp.asarray(span_idx[k])[:, None, :], (b_count, bq, t_max))
        span = span + jnp.take_along_axis(p, sidx, axis=2)
    cost = cost - span / float(len(_POS_KEYS))
    cost_np = np.asarray(cost)                                          # single D2H

    indices = []
    for b in range(b_count):
        n = n_ts[b]
        if n == 0:
            indices.append(empty)
            continue
        c = cost_np[b, :, :n]
        used = np.zeros(c.shape[0], bool)
        src, tgt = [], []
        for j in range(n):
            col = np.where(used, np.inf, c[:, j])
            q = int(np.argmin(col))
            used[q] = True
            src.append(q)
            tgt.append(j)
        indices.append((np.asarray(src, np.int64), np.asarray(tgt, np.int64)))
    return indices


# ----------------------------------------------------------------------------
# Criterion
# ----------------------------------------------------------------------------
class SetCriterionSubAbsaPallas:
    POS_KEYS = _POS_KEYS

    def __init__(self, num_classes, na_coef, losses):
        self.num_classes = num_classes
        self.losses = tuple(losses)
        w = np.ones(num_classes, np.float32)
        w[0] = na_coef
        self.compare_weight_np = w

    def __call__(self, outputs, targets):
        indices = hungarian_matcher_sub_absa(outputs, targets)
        loss_dict = {}
        if any(l in ('compare_loss', 'entity_sub_absa') for l in self.losses):
            loss_dict.update(self._fused_ce_losses(outputs, targets, indices))
        if 'cardinality' in self.losses:
            loss_dict.update(self.loss_cardinality(outputs, targets, indices))

        terms = []
        for loss in self.losses:
            if loss == 'compare_loss':
                terms.append(loss_dict['compare_loss'])
            elif loss == 'entity_sub_absa':
                terms.extend([loss_dict['sub'], loss_dict['obj'], loss_dict['aspect']])
            elif loss == 'cardinality':
                terms.append(loss_dict['cardinality_error'])
            else:
                raise ValueError(f"unknown loss {loss}")
        return sum(terms)

    @staticmethod
    def _src_permutation_idx(indices):
        batch_idx = np.concatenate(
            [np.full(len(src), i, np.int64) for i, (src, _) in enumerate(indices)])
        src_idx = np.concatenate([np.asarray(src, np.int64) for src, _ in indices])
        return batch_idx, src_idx

    def _fused_ce_losses(self, outputs, targets, indices):
        zero = jnp.float32(0.0)
        all_empty = all((len(s) == 0 and len(t) == 0) for s, t in indices)
        if all_empty:
            return {'compare_loss': zero, 'sub': zero, 'obj': zero, 'aspect': zero}

        rel_logits = jnp.asarray(outputs['pred_rel_logits'])
        bsz, nq, ncls = rel_logits.shape
        seq_len = outputs[self.POS_KEYS[0] + '_logits'].shape[-1]
        c_max = max(ncls, seq_len)

        batch_idx, src_idx = self._src_permutation_idx(indices)
        m = batch_idx.shape[0]

        # group 0: compare_loss rows (matched queries get class 1, else 0)
        target_classes = np.zeros((bsz, nq), np.int32)
        target_classes[batch_idx, src_idx] = 1
        comp_targets = target_classes.reshape(bsz * nq)
        comp_w = self.compare_weight_np[comp_targets]
        comp_rows = rel_logits.reshape(bsz * nq, ncls)
        if ncls < c_max:
            pad = jnp.full((bsz * nq, c_max - ncls), _NEG_INF, comp_rows.dtype)
            comp_rows = jnp.concatenate([comp_rows, pad], axis=1)

        # groups 1..6: gathered entity start/end logits (unit-weight CE)
        bi = jnp.asarray(batch_idx, jnp.int32)
        si = jnp.asarray(src_idx, jnp.int32)
        ent_stack = jnp.stack(
            [jnp.asarray(outputs[k + '_logits']) for k in self.POS_KEYS], axis=0)   # [6,B,Q,L]
        ent_rows = ent_stack[:, bi, si, :].reshape(6 * m, seq_len)
        if seq_len < c_max:
            pad = jnp.full((6 * m, c_max - seq_len), _NEG_INF, ent_rows.dtype)
            ent_rows = jnp.concatenate([ent_rows, pad], axis=1)

        ent_targets = np.concatenate([
            np.concatenate([np.asarray(t[k + '_index'])[j]
                            for t, (_, j) in zip(targets, indices)]).astype(np.int32)
            for k in self.POS_KEYS])

        all_rows = jnp.concatenate([comp_rows, ent_rows], axis=0)       # [R, c_max]
        all_targets = np.concatenate([comp_targets, ent_targets]).astype(np.int32)
        all_weights = np.concatenate([comp_w, np.ones(6 * m, np.float32)])
        all_gids = np.concatenate([np.zeros(bsz * nq, np.int32),
                                   np.repeat(np.arange(1, 7, dtype=np.int32), m)])

        num, den = fused_weighted_ce(all_rows, all_targets, all_weights, all_gids)
        per_group = num / den                                           # [7]
        return {'compare_loss': per_group[0],
                'sub': 0.5 * (per_group[1] + per_group[2]),
                'obj': 0.5 * (per_group[3] + per_group[4]),
                'aspect': 0.5 * (per_group[5] + per_group[6])}

    def loss_cardinality(self, outputs, targets, indices):
        rel_logits = jnp.asarray(outputs['pred_rel_logits'])
        tgt_lengths = jnp.asarray(
            [[float(len(t['labels']))] for t in targets], jnp.float32)   # [B, 1]
        return {'cardinality_error': cardinality_error(rel_logits, tgt_lengths)}


# ----------------------------------------------------------------------------
# Pure-numpy reference (same matcher indices) for correctness checking
# ----------------------------------------------------------------------------
def _reference_total(outputs, targets, indices, num_classes, na_coef, losses):
    o = {k: np.asarray(v, np.float64) for k, v in outputs.items()}
    batch_idx = np.concatenate(
        [np.full(len(s), i, np.int64) for i, (s, _) in enumerate(indices)])
    src_idx = np.concatenate([np.asarray(s, np.int64) for s, _ in indices])

    def ce(logits, tgt, w=None):
        m = logits.max(-1, keepdims=True)
        logp = logits - m - np.log(np.exp(logits - m).sum(-1, keepdims=True))
        nll = -logp[np.arange(logits.shape[0]), tgt]
        if w is None:
            return float(nll.mean())
        wt = w[tgt]
        return float((nll * wt).sum() / wt.sum())

    total = 0.0
    rel = o['pred_rel_logits']
    b, q, c = rel.shape
    for loss in losses:
        if loss == 'compare_loss':
            w = np.ones(num_classes, np.float64)
            w[0] = na_coef
            tc = np.zeros((b, q), np.int64)
            tc[batch_idx, src_idx] = 1
            total += ce(rel.reshape(b * q, c), tc.reshape(-1), w)
        elif loss == 'entity_sub_absa':
            for ks, ke in (('sub_start', 'sub_end'), ('obj_start', 'obj_end'),
                           ('aspect_start', 'aspect_end')):
                sel_s = o[ks + '_logits'][batch_idx, src_idx]
                sel_e = o[ke + '_logits'][batch_idx, src_idx]
                t_s = np.concatenate([np.asarray(t[ks + '_index'])[j]
                                      for t, (_, j) in zip(targets, indices)])
                t_e = np.concatenate([np.asarray(t[ke + '_index'])[j]
                                      for t, (_, j) in zip(targets, indices)])
                total += 0.5 * (ce(sel_s, t_s) + ce(sel_e, t_e))
        elif loss == 'cardinality':
            card_pred = (rel.argmax(-1) != c - 1).sum(1).astype(np.float64)
            tl = np.asarray([len(t['labels']) for t in targets], np.float64)
            total += float(np.abs(card_pred - tl).mean())
    return total


# ----------------------------------------------------------------------------
# Demo
# ----------------------------------------------------------------------------
if __name__ == "__main__":
    B, Q, C, L = 2, 8, 4, 16          # batch, queries, relation classes, seq len
    key = jax.random.PRNGKey(0)
    keys = jax.random.split(key, 7)
    outputs = {
        'pred_rel_logits':     jax.random.normal(keys[0], (B, Q, C), jnp.float32),
        'sub_start_logits':    jax.random.normal(keys[1], (B, Q, L), jnp.float32),
        'sub_end_logits':      jax.random.normal(keys[2], (B, Q, L), jnp.float32),
        'obj_start_logits':    jax.random.normal(keys[3], (B, Q, L), jnp.float32),
        'obj_end_logits':      jax.random.normal(keys[4], (B, Q, L), jnp.float32),
        'aspect_start_logits': jax.random.normal(keys[5], (B, Q, L), jnp.float32),
        'aspect_end_logits':   jax.random.normal(keys[6], (B, Q, L), jnp.float32),
    }
    targets = [
        {'relation': np.array([1, 2]), 'labels': np.array([1, 2]),
         'sub_start_index': np.array([3, 7]),     'sub_end_index': np.array([4, 8]),
         'obj_start_index': np.array([1, 10]),    'obj_end_index': np.array([2, 11]),
         'aspect_start_index': np.array([5, 12]), 'aspect_end_index': np.array([6, 13])},
        {'relation': np.array([2, 1, 3]), 'labels': np.array([2, 1, 3]),
         'sub_start_index': np.array([0, 4, 9]),  'sub_end_index': np.array([1, 5, 10]),
         'obj_start_index': np.array([2, 6, 11]), 'obj_end_index': np.array([3, 7, 12]),
         'aspect_start_index': np.array([4, 8, 13]), 'aspect_end_index': np.array([5, 9, 14])},
    ]

    criterion = SetCriterionSubAbsaPallas(
        num_classes=C, na_coef=0.5,
        losses=('compare_loss', 'entity_sub_absa', 'cardinality'))

    total_loss = criterion(outputs, targets)
    total_loss = jax.block_until_ready(total_loss)
    assert np.isfinite(float(total_loss))

    # correctness check against a pure-numpy reference using the same indices
    indices = hungarian_matcher_sub_absa(outputs, targets)
    ref_total = _reference_total(outputs, targets, indices, C, 0.5, criterion.losses)
    np.testing.assert_allclose(float(total_loss), ref_total, rtol=1e-3, atol=1e-3)

    print("KERNEL_OK")
</pallas_src>

<mosaic_0001>
module attributes {stable_mosaic.version = 11 : i64} {
  func.func @_fused_ce_kernel(%arg0: i32, %arg1: memref<16x128xf32, #tpu.memory_space<vmem>>, %arg2: memref<1x128xi32, #tpu.memory_space<vmem>>, %arg3: memref<1x128xf32, #tpu.memory_space<vmem>>, %arg4: memref<1x128xi32, #tpu.memory_space<vmem>>, %arg5: memref<16x128xf32, #tpu.memory_space<vmem>>) attributes {dimension_semantics = [#tpu.dimension_semantics<parallel>], iteration_bounds = array<i64: 1>, scalar_prefetch = 0 : i64, scratch_operands = 0 : i64, tpu.core_type = #tpu.core_type<tc>, window_params = [{transform_indices = @transform_0, window_bounds = array<i64: 16, 128>}, {transform_indices = @transform_1, window_bounds = array<i64: 1, 128>}, {transform_indices = @transform_2, window_bounds = array<i64: 1, 128>}, {transform_indices = @transform_3, window_bounds = array<i64: 1, 128>}, {transform_indices = @transform_4, window_bounds = array<i64: 16, 128>}]} {
    %c0 = arith.constant 0 : index
    %c0_0 = arith.constant 0 : index
    %0 = vector.load %arg1[%c0, %c0_0] : memref<16x128xf32, #tpu.memory_space<vmem>>, vector<16x128xf32>
    %c0_1 = arith.constant 0 : index
    %c0_2 = arith.constant 0 : index
    %1 = vector.load %arg2[%c0_1, %c0_2] : memref<1x128xi32, #tpu.memory_space<vmem>>, vector<1x128xi32>
    %c0_3 = arith.constant 0 : index
    %c0_4 = arith.constant 0 : index
    %2 = vector.load %arg3[%c0_3, %c0_4] : memref<1x128xf32, #tpu.memory_space<vmem>>, vector<1x128xf32>
    %c0_5 = arith.constant 0 : index
    %c0_6 = arith.constant 0 : index
    %3 = vector.load %arg4[%c0_5, %c0_6] : memref<1x128xi32, #tpu.memory_space<vmem>>, vector<1x128xi32>
    %cst = arith.constant dense<0xFF800000> : vector<128xf32>
    %4 = vector.multi_reduction <maximumf>, %0, %cst [0] : vector<16x128xf32> to vector<128xf32>
    %5 = vector.shape_cast %4 : vector<128xf32> to vector<1x128xf32>
    %6 = vector.broadcast %5 : vector<1x128xf32> to vector<16x128xf32>
    %7 = arith.subf %0, %6 : vector<16x128xf32>
    %8 = math.exp %7 : vector<16x128xf32>
    %cst_7 = arith.constant dense<0.000000e+00> : vector<128xf32>
    %9 = vector.multi_reduction <add>, %8, %cst_7 [0] : vector<16x128xf32> to vector<128xf32>
    %10 = vector.shape_cast %9 : vector<128xf32> to vector<1x128xf32>
    %11 = math.log %10 : vector<1x128xf32>
    %12 = tpu.iota {dimensions = array<i32: 0>} : vector<16x128xi32>
    %13 = vector.broadcast %1 : vector<1x128xi32> to vector<16x128xi32>
    %14 = arith.cmpi eq, %12, %13 : vector<16x128xi32>
    %cst_8 = arith.constant 0.000000e+00 : f32
    %15 = vector.broadcast %cst_8 : f32 to vector<16x128xf32>
    %16 = arith.select %14, %0, %15 : vector<16x128xi1>, vector<16x128xf32>
    %cst_9 = arith.constant dense<0.000000e+00> : vector<128xf32>
    %17 = vector.multi_reduction <add>, %16, %cst_9 [0] : vector<16x128xf32> to vector<128xf32>
    %18 = vector.shape_cast %17 : vector<128xf32> to vector<1x128xf32>
    %19 = arith.addf %11, %5 : vector<1x128xf32>
    %20 = arith.subf %19, %18 : vector<1x128xf32>
    %21 = arith.mulf %2, %20 : vector<1x128xf32>
    %22 = tpu.iota {dimensions = array<i32: 0>} : vector<8x128xi32>
    %23 = vector.broadcast %3 : vector<1x128xi32> to vector<8x128xi32>
    %24 = arith.cmpi eq, %22, %23 : vector<8x128xi32>
    %cst_10 = arith.constant 0.000000e+00 : f32
    %25 = vector.shape_cast %21 : vector<1x128xf32> to vector<1x128xf32>
    %26 = vector.broadcast %25 : vector<1x128xf32> to vector<8x128xf32>
    %27 = vector.broadcast %cst_10 : f32 to vector<8x128xf32>
    %28 = arith.select %24, %26, %27 : vector<8x128xi1>, vector<8x128xf32>
    %cst_11 = arith.constant 0.000000e+00 : f32
    %29 = vector.shape_cast %2 : vector<1x128xf32> to vector<1x128xf32>
    %30 = vector.broadcast %29 : vector<1x128xf32> to vector<8x128xf32>
    %31 = vector.broadcast %cst_11 : f32 to vector<8x128xf32>
    %32 = arith.select %24, %30, %31 : vector<8x128xi1>, vector<8x128xf32>
    %c0_12 = arith.constant 0 : index
    %c0_13 = arith.constant 0 : index
    %33 = vector.load %arg5[%c0_12, %c0_13] : memref<16x128xf32, #tpu.memory_space<vmem>>, vector<8x128xf32>
    tpu.vector_store %arg5[%c0_12, %c0_13], %28 {strides = array<i32>} : memref<16x128xf32, #tpu.memory_space<vmem>>, vector<8x128xf32>,
    %c8 = arith.constant 8 : index
    %c0_14 = arith.constant 0 : index
    %34 = vector.load %arg5[%c8, %c0_14] : memref<16x128xf32, #tpu.memory_space<vmem>>, vector<8x128xf32>
    tpu.vector_store %arg5[%c8, %c0_14], %32 {strides = array<i32>} : memref<16x128xf32, #tpu.memory_space<vmem>>, vector<8x128xf32>,
    return
  }
  func.func @transform_0(%arg0: i32) -> (i32, i32) {
    %c0_i32 = arith.constant 0 : i32
    %c0_i32_0 = arith.constant 0 : i32
    return %c0_i32, %arg0 : i32, i32
  }
  func.func @transform_1(%arg0: i32) -> (i32, i32) {
    %c0_i32 = arith.constant 0 : i32
    %c0_i32_0 = arith.constant 0 : i32
    return %c0_i32, %arg0 : i32, i32
  }
  func.func @transform_2(%arg0: i32) -> (i32, i32) {
    %c0_i32 = arith.constant 0 : i32
    %c0_i32_0 = arith.constant 0 : i32
    return %c0_i32, %arg0 : i32, i32
  }
  func.func @transform_3(%arg0: i32) -> (i32, i32) {
    %c0_i32 = arith.constant 0 : i32
    %c0_i32_0 = arith.constant 0 : i32
    return %c0_i32, %arg0 : i32, i32
  }
  func.func @transform_4(%arg0: i32) -> (i32, i32) {
    %c0_i32 = arith.constant 0 : i32
    %c0_i32_0 = arith.constant 0 : i32
    return %arg0, %c0_i32 : i32, i32
  }
}

</mosaic_0001>

<llo_original>
// kernel: tpu_custom_call.1
$region0: #{tpu_custom_call.1}
  #allocation0 [shape = 'u32[]', space=smem, size = 0x4, offset = 0x4, fixed_abs, tag = 'smem constant byte address 0x4 - core index']
  #allocation1 [shape = 'u32[144,128]{1,0:T(1,128)}', space=vmem, size = 0x12000, scoped, tag = 'internal scratch']
  %s0 = inlined_call_operand.hbm [shape: f32[16,128], index: 0, kind: input, shape index: {}]
  %s1 = inlined_call_operand.vmem [shape: s32[1,128], index: 1, kind: input, shape index: {}]
  %s2 = inlined_call_operand.vmem [shape: f32[1,128], index: 2, kind: input, shape index: {}]
  %s3 = inlined_call_operand.vmem [shape: s32[1,128], index: 3, kind: input, shape index: {}]
  %s4 = inlined_call_operand.hbm [shape: f32[16,128], index: 4, kind: output, shape index: {}]
  %s5 = sld [smem:[#allocation0]]
  $region30: #{tpu_custom_call.1} parent=0
    _
  %s7 = ssub.s32 1, %s5
  %s8 = scalar_select 0, %s7, %s5
  $region1: #{tpu_custom_call.1} parent=0
    #allocation2 [shape = 'u8[8192]{0}', space=vmem, size = 0x2000, scoped, tag = 'input window, operand 0, single buffered']
    #allocation3 [shape = 's32[1]{0}', space=sflag, size = 0x4, scoped, tag = 'scoped memory for tpu_custom_call.1']
    #allocation4 [shape = 's32[1]{0}', space=sflag, size = 0x4, scoped, tag = 'scoped memory for tpu_custom_call.1']
    #allocation5 [shape = 'u8[8192]{0}', space=vmem, size = 0x2000, scoped, tag = 'output window, operand 0, single buffered']
    %9 = vsyncpa [#allocation3], 0
    %10 = vsyncpa [#allocation4], 0
    // Predicated region
    $region2: #{tpu_custom_call.1} parent=1 // pred_check
      _
    $region3: #{tpu_custom_call.1} parent=1 // pred_check_branch
      %12 = sbr.rel (0) target = $region5
    $region4: #{tpu_custom_call.1} parent=1 // pred_region
      %s14 = ssub.s32 256, 256
      %15 = vsyncadd [#allocation3], %s14
      %s16 = sshll.u32 [#allocation2], 4
      %s17 = int_to_ptr.vmem [resolvable:$true] %s16
      %22 = dma.hbm_to_vmem [thread:$0]  %s0, 256, %s17, [#allocation3], 128, 128, 8
    $region5: #{tpu_custom_call.1} parent=1 // pred_fallthru
      _
    // Predicated region
    $region6: #{tpu_custom_call.1} parent=1 // pred_check
      _
    $region7: #{tpu_custom_call.1} parent=1 // pred_check_branch
      %24 = sbr.rel (0) target = $region9
    $region8: #{tpu_custom_call.1} parent=1 // pred_region
      _
    $region9: #{tpu_custom_call.1} parent=1 // pred_fallthru
      _
    // Predicated region
    $region10: #{tpu_custom_call.1} parent=1 // pred_check
      _
    $region11: #{tpu_custom_call.1} parent=1 // pred_check_branch
      %26 = sbr.rel (0) target = $region13
    $region12: #{tpu_custom_call.1} parent=1 // pred_region
      _
    $region13: #{tpu_custom_call.1} parent=1 // pred_fallthru
      _
    // Predicated region
    $region14: #{tpu_custom_call.1} parent=1 // pred_check
      _
    $region15: #{tpu_custom_call.1} parent=1 // pred_check_branch
      %28 = sbr.rel (0) target = $region17
    $region16: #{tpu_custom_call.1} parent=1 // pred_region
      _
    $region17: #{tpu_custom_call.1} parent=1 // pred_fallthru
      _
    // Predicated region
    $region18: #{tpu_custom_call.1} parent=1 // pred_check
      _
    $region19: #{tpu_custom_call.1} parent=1 // pred_check_branch
      %30 = sbr.rel (0) target = $region21
    $region20: #{tpu_custom_call.1} parent=1 // pred_region
      %31 = dma.done [#allocation3], 256
    $region21: #{tpu_custom_call.1} parent=1 // pred_fallthru
      _
    %v32 = vld [vmem:[#allocation2] sm:$0xff]
    %v33 = vld [vmem:[#allocation2 + $0x8] sm:$0xff]
    %v34 = vld [vmem:[%s1] sm:$0x1]
    %v35 = vld [vmem:[%s2] sm:$0x1]
    %v36 = vld [vmem:[%s3] sm:$0x1]
    %v37 = vmax.f32 %v32, %v33
    %v38 = vrot.slane %v37, 4
    %v39 = vmax.f32 %v37, %v38
    %v40 = vrot.slane %v39, 2
    %v41 = vmax.f32 %v39, %v40
    %v42 = vrot.slane %v41, 1
    %v43 = vmax.f32 %v41, %v42
    %v44 = vsub.f32 %v32, %v43
    %v45 = vsub.f32 %v33, %v43
    %v46 = vmul.f32 %v44, 1.442695
    %v47 = vpow.pop %v46
    %v48 = vmul.f32 %v45, 1.442695
    %v49 = vpow.pop %v48
    %v50 = vadd.f32 %v47, %v49
    %v51 = vrot.slane %v50, 4
    %v52 = vadd.f32 %v50, %v51
    %v53 = vrot.slane %v52, 2
    %v54 = vadd.f32 %v52, %v53
    %v55 = vrot.slane %v54, 1
    %v56 = vadd.f32 %v54, %v55
    %v57 = vlog2.pop %v56
    %v58 = vmul.f32 %v57, 0.6931472
    %v59 = vlaneseq
    %v60 = vshrl.u32 %v59, 7
    %v61 = vadd.s32 %v60, 8
    %v62 = vlaneseq
    %v63 = vshrl.u32 %v62, 7
    %v64 = vsub.s32 0, %v63
    %v65 = vrot.slane %v34, %v64
    %vm66 = vcmp.eq.s32.totalorder %v60, %v65
    %vm67 = vcmp.eq.s32.totalorder %v61, %v65
    %v68 = vsel %vm66, %v32, 0.0
    %v69 = vsel %vm67, %v33, 0.0
    %v70 = vadd.f32 %v68, %v69
    %v71 = vrot.slane %v70, 4
    %v72 = vadd.f32 %v70, %v71
    %v73 = vrot.slane %v72, 2
    %v74 = vadd.f32 %v72, %v73
    %v75 = vrot.slane %v74, 1
    %v76 = vadd.f32 %v74, %v75
    %v77 = vadd.f32 %v58, %v43
    %v78 = vsub.f32 %v77, %v76
    %v79 = vmul.f32 %v35, %v78
    %v80 = vlaneseq
    %v81 = vshrl.u32 %v80, 7
    %v82 = vsub.s32 0, %v81
    %v83 = vrot.slane %v36, %v82
    %vm84 = vcmp.eq.s32.totalorder %v60, %v83
    %v86 = vlaneseq
    %v87 = vshrl.u32 %v86, 7
    %v88 = vsub.s32 0, %v87
    %v89 = vrot.slane %v79, %v88
    %v91 = vsel %vm84, %v89, 0.0
    %v93 = vlaneseq
    %v94 = vshrl.u32 %v93, 7
    %v95 = vsub.s32 0, %v94
    %v96 = vrot.slane %v35, %v95
    %v98 = vsel %vm84, %v96, 0.0
    %99 = vst [vmem:[#allocation5] sm:$0xff] %v91
    %100 = vst [vmem:[#allocation5 + $0x8] sm:$0xff] %v98
    // Predicated region
    $region22: #{tpu_custom_call.1} parent=1 // pred_check
      _
    $region23: #{tpu_custom_call.1} parent=1 // pred_check_branch
      %102 = sbr.rel (0) target = $region25
    $region24: #{tpu_custom_call.1} parent=1 // pred_region
      %s104 = ssub.s32 256, 256
      %105 = vsyncadd [#allocation4], %s104
      %s106 = sshll.u32 [#allocation5], 4
      %s107 = int_to_ptr.vmem [resolvable:$true] %s106
      %112 = dma.vmem_to_hbm [thread:$0]  %s107, 256, %s4, [#allocation4], 128, 128, 8
    $region25: #{tpu_custom_call.1} parent=1 // pred_fallthru
      _
    // Predicated region
    $region26: #{tpu_custom_call.1} parent=1 // pred_check
      _
    $region27: #{tpu_custom_call.1} parent=1 // pred_check_branch
      %114 = sbr.rel (0) target = $region29
    $region28: #{tpu_custom_call.1} parent=1 // pred_region
      %115 = dma.done [#allocation4], 256
    $region29: #{tpu_custom_call.1} parent=1 // pred_fallthru
      _
    %116 = vsyncpa [#allocation3], 1
    %117 = vsyncpa [#allocation4], 1

</llo_original>
